<compile_context>
chip_gen: v5e
topology: v5e:2x2
jax: 0.10.0
libtpu: 0.0.40
codegen_flags: <defaults>
</compile_context>

<pallas_src>
import functools

import jax
import jax.numpy as jnp
from jax.experimental import pallas as pl
from jax.experimental.pallas import tpu as pltpu

HIDDEN = 50
NUM_CLASSES = 10


def _round_up(x: int, m: int) -> int:
    return ((x + m - 1) // m) * m


def _pick_tile(B: int, tb: int) -> int:
    # Multiple of 8 sublanes; try to give the grid >= 2 steps so both v7x
    # TensorCores get work, while capping the tile at `tb`.
    half = _round_up(max(1, -(-B // 2)), 8)
    return max(8, min(tb, half))


def mlp_kernel(x_ref, w1_ref, b1_ref, w2_ref, b2_ref, o_ref):
    # Cast activations to bf16 in-kernel (no separate HBM pass over x).
    xb = x_ref[...].astype(jnp.bfloat16)
    # fc1: (TB, D) bf16 @ (D, HP) bf16 -> f32 on the MXU
    h = jnp.dot(xb, w1_ref[...], preferred_element_type=jnp.float32)
    h = jnp.maximum(h + b1_ref[...], 0.0)            # bias + ReLU in f32 (VPU)
    # fc2: (TB, HP) bf16 @ (HP, C) bf16 -> (TB, C) f32 on the MXU
    out = jnp.dot(h.astype(jnp.bfloat16), w2_ref[...],
                  preferred_element_type=jnp.float32)
    o_ref[...] = (out + b2_ref[...]).astype(o_ref.dtype)


def prepare_params(w1, b1, w2, b2):
    """One-time padding / casting of the weights. Call once at init."""
    D, H = w1.shape
    C = w2.shape[1]
    HP = _round_up(max(H, 128), 128)   # hidden 50 -> 128 (zero pad is a no-op:
                                       # ReLU(0)=0 and zero W2 rows add nothing)
    w1p = jnp.zeros((D, HP), jnp.bfloat16).at[:, :H].set(w1.astype(jnp.bfloat16))
    b1p = jnp.zeros((1, HP), jnp.float32).at[:, :H].set(b1.reshape(1, H))
    w2p = jnp.zeros((HP, C), jnp.bfloat16).at[:H, :].set(w2.astype(jnp.bfloat16))
    b2p = b2.reshape(1, C).astype(jnp.float32)
    return w1p, b1p, w2p, b2p


@functools.partial(jax.jit, static_argnames=("tb",))
def mlp_forward(x, w1p, b1p, w2p, b2p, *, tb=2048):
    B, D = x.shape
    HP = w1p.shape[1]
    C = w2p.shape[1]

    TB = _pick_tile(B, tb)
    Bp = _round_up(B, TB)

    # Only pad the ragged batch tail (zero rows -> garbage-but-finite outputs
    # that get sliced off); no dtype conversion pass over x.
    xp = x if Bp == B else jnp.pad(x, ((0, Bp - B), (0, 0)))

    grid = (pl.cdiv(Bp, TB),)
    cost = pl.CostEstimate(
        flops=2 * Bp * (D * HP + HP * C),
        transcendentals=0,
        bytes_accessed=(Bp * D * 4            # x (f32)
                        + D * HP * 2 + HP * C * 2   # weights (bf16)
                        + (HP + C) * 4        # biases (f32)
                        + Bp * C * 4),        # narrow output (f32)
    )

    out_padded = pl.pallas_call(
        mlp_kernel,
        out_shape=jax.ShapeDtypeStruct((Bp, C), jnp.float32),
        grid_spec=pltpu.PrefetchScalarGridSpec(
            num_scalar_prefetch=0,
            grid=grid,
            in_specs=[
                pl.BlockSpec((TB, D), lambda i: (i, 0)),    # activations: tiled over batch
                pl.BlockSpec((D, HP), lambda i: (0, 0)),    # weights/biases: VMEM-resident
                pl.BlockSpec((1, HP), lambda i: (0, 0)),
                pl.BlockSpec((HP, C), lambda i: (0, 0)),
                pl.BlockSpec((1, C), lambda i: (0, 0)),
            ],
            # Narrow output block: last dim == full array dim (C=10) is legal;
            # the masked vst is cheap and cuts writeback ~12x vs a 128-wide slab.
            out_specs=pl.BlockSpec((TB, C), lambda i: (i, 0)),
        ),
        compiler_params=pltpu.CompilerParams(
            # Batch axis is independent -> shard across TensorCores on v7x.
            dimension_semantics=("parallel",),
        ),
        cost_estimate=cost,
    )(xp, w1p, b1p, w2p, b2p)

    return out_padded if Bp == B else out_padded[:B]


def init_params(key, input_size, hidden, num_classes):
    # Deterministic init mimicking nn.Linear's U(-1/sqrt(fan_in), 1/sqrt(fan_in)).
    k1, k2, k3, k4 = jax.random.split(key, 4)
    bound1 = 1.0 / jnp.sqrt(input_size)
    bound2 = 1.0 / jnp.sqrt(hidden)
    w1 = jax.random.uniform(k1, (input_size, hidden), jnp.float32, -bound1, bound1)
    b1 = jax.random.uniform(k2, (1, hidden), jnp.float32, -bound1, bound1)
    w2 = jax.random.uniform(k3, (hidden, num_classes), jnp.float32, -bound2, bound2)
    b2 = jax.random.uniform(k4, (1, num_classes), jnp.float32, -bound2, bound2)
    return w1, b1, w2, b2


if __name__ == "__main__":
    key = jax.random.PRNGKey(0)
    kx, kp = jax.random.split(key)

    batch = 8
    input_size = 32  # consistent with nn.Linear(input_size, 50)

    x = jax.random.normal(kx, (batch, input_size), jnp.float32)
    w1, b1, w2, b2 = init_params(kp, input_size, HIDDEN, NUM_CLASSES)

    # One-time weight preparation (hoisted out of the per-call path).
    w1p, b1p, w2p, b2p = prepare_params(w1, b1, w2, b2)
    w1p, b1p, w2p, b2p = jax.block_until_ready((w1p, b1p, w2p, b2p))

    out = mlp_forward(x, w1p, b1p, w2p, b2p)
    jax.block_until_ready(out)
    assert out.shape == (batch, NUM_CLASSES)

    # Reference 1: identical bf16-matmul / f32-accumulate path in plain JAX (tight).
    xb, w1b, w2b = (a.astype(jnp.bfloat16) for a in (x, w1, w2))
    h_ref = jnp.maximum(jnp.dot(xb, w1b, preferred_element_type=jnp.float32) + b1, 0.0)
    ref_bf16 = jnp.dot(h_ref.astype(jnp.bfloat16), w2b,
                       preferred_element_type=jnp.float32) + b2
    assert jnp.allclose(out, ref_bf16, atol=1e-4, rtol=1e-4)

    # Reference 2: full-f32 PyTorch-equivalent math (loose, covers bf16 rounding).
    ref_f32 = jnp.maximum(x @ w1 + b1, 0.0) @ w2 + b2
    assert jnp.allclose(out, ref_f32, atol=3e-2, rtol=3e-2)

    print("KERNEL_OK")
</pallas_src>

<mosaic_0001>
module attributes {stable_mosaic.version = 11 : i64} {
  func.func @mlp_kernel(%arg0: i32, %arg1: memref<8x32xf32, #tpu.memory_space<vmem>>, %arg2: memref<32x128xbf16, #tpu.memory_space<vmem>>, %arg3: memref<1x128xf32, #tpu.memory_space<vmem>>, %arg4: memref<128x10xbf16, #tpu.memory_space<vmem>>, %arg5: memref<1x10xf32, #tpu.memory_space<vmem>>, %arg6: memref<8x10xf32, #tpu.memory_space<vmem>>) attributes {dimension_semantics = [#tpu.dimension_semantics<parallel>], iteration_bounds = array<i64: 1>, scalar_prefetch = 0 : i64, scratch_operands = 0 : i64, tpu.core_type = #tpu.core_type<tc>, window_params = [{transform_indices = @transform_0, window_bounds = array<i64: 8, 32>}, {pipeline_mode = #tpu.pipeline_mode<synchronous>, transform_indices = @transform_1, window_bounds = array<i64: 32, 128>}, {pipeline_mode = #tpu.pipeline_mode<synchronous>, transform_indices = @transform_2, window_bounds = array<i64: 1, 128>}, {pipeline_mode = #tpu.pipeline_mode<synchronous>, transform_indices = @transform_3, window_bounds = array<i64: 128, 10>}, {pipeline_mode = #tpu.pipeline_mode<synchronous>, transform_indices = @transform_4, window_bounds = array<i64: 1, 10>}, {transform_indices = @transform_5, window_bounds = array<i64: 8, 10>}]} {
    %c0 = arith.constant 0 : index
    %c0_0 = arith.constant 0 : index
    %0 = vector.load %arg1[%c0, %c0_0] : memref<8x32xf32, #tpu.memory_space<vmem>>, vector<8x32xf32>
    %1 = arith.truncf %0 : vector<8x32xf32> to vector<8x32xbf16>
    %c0_1 = arith.constant 0 : index
    %c0_2 = arith.constant 0 : index
    %2 = vector.load %arg2[%c0_1, %c0_2] : memref<32x128xbf16, #tpu.memory_space<vmem>>, vector<32x128xbf16>
    %cst = arith.constant dense<0.000000e+00> : vector<8x128xf32>
    %3 = tpu.matmul %1, %2, %cst {dimension_numbers = #tpu.dot_dimension_numbers<[1], [0], [0], [1], [0, 0, 1, 1], [], []>} : vector<8x32xbf16>, vector<32x128xbf16>, vector<8x128xf32> -> vector<8x128xf32>
    %c0_3 = arith.constant 0 : index
    %c0_4 = arith.constant 0 : index
    %4 = vector.load %arg3[%c0_3, %c0_4] : memref<1x128xf32, #tpu.memory_space<vmem>>, vector<1x128xf32>
    %5 = vector.broadcast %4 : vector<1x128xf32> to vector<8x128xf32>
    %6 = arith.addf %3, %5 : vector<8x128xf32>
    %cst_5 = arith.constant 0.000000e+00 : f32
    %7 = vector.broadcast %cst_5 : f32 to vector<8x128xf32>
    %8 = arith.maximumf %6, %7 : vector<8x128xf32>
    %9 = arith.truncf %8 : vector<8x128xf32> to vector<8x128xbf16>
    %c0_6 = arith.constant 0 : index
    %c0_7 = arith.constant 0 : index
    %10 = vector.load %arg4[%c0_6, %c0_7] : memref<128x10xbf16, #tpu.memory_space<vmem>>, vector<128x10xbf16>
    %cst_8 = arith.constant dense<0.000000e+00> : vector<8x10xf32>
    %11 = tpu.matmul %9, %10, %cst_8 {dimension_numbers = #tpu.dot_dimension_numbers<[1], [0], [0], [1], [0, 0, 1, 1], [], []>} : vector<8x128xbf16>, vector<128x10xbf16>, vector<8x10xf32> -> vector<8x10xf32>
    %c0_9 = arith.constant 0 : index
    %c0_10 = arith.constant 0 : index
    %12 = vector.load %arg5[%c0_9, %c0_10] : memref<1x10xf32, #tpu.memory_space<vmem>>, vector<1x10xf32>
    %13 = vector.broadcast %12 : vector<1x10xf32> to vector<8x10xf32>
    %14 = arith.addf %11, %13 : vector<8x10xf32>
    %c0_11 = arith.constant 0 : index
    %c0_12 = arith.constant 0 : index
    %15 = vector.load %arg6[%c0_11, %c0_12] : memref<8x10xf32, #tpu.memory_space<vmem>>, vector<8x10xf32>
    tpu.vector_store %arg6[%c0_11, %c0_12], %14 {strides = array<i32>} : memref<8x10xf32, #tpu.memory_space<vmem>>, vector<8x10xf32>,
    return
  }
  func.func @transform_0(%arg0: i32) -> (i32, i32) {
    %c0_i32 = arith.constant 0 : i32
    %c0_i32_0 = arith.constant 0 : i32
    return %arg0, %c0_i32 : i32, i32
  }
  func.func @transform_1(%arg0: i32) -> (i32, i32) {
    %c0_i32 = arith.constant 0 : i32
    %c0_i32_0 = arith.constant 0 : i32
    %c0_i32_1 = arith.constant 0 : i32
    return %c0_i32, %c0_i32_0 : i32, i32
  }
  func.func @transform_2(%arg0: i32) -> (i32, i32) {
    %c0_i32 = arith.constant 0 : i32
    %c0_i32_0 = arith.constant 0 : i32
    %c0_i32_1 = arith.constant 0 : i32
    return %c0_i32, %c0_i32_0 : i32, i32
  }
  func.func @transform_3(%arg0: i32) -> (i32, i32) {
    %c0_i32 = arith.constant 0 : i32
    %c0_i32_0 = arith.constant 0 : i32
    %c0_i32_1 = arith.constant 0 : i32
    return %c0_i32, %c0_i32_0 : i32, i32
  }
  func.func @transform_4(%arg0: i32) -> (i32, i32) {
    %c0_i32 = arith.constant 0 : i32
    %c0_i32_0 = arith.constant 0 : i32
    %c0_i32_1 = arith.constant 0 : i32
    return %c0_i32, %c0_i32_0 : i32, i32
  }
  func.func @transform_5(%arg0: i32) -> (i32, i32) {
    %c0_i32 = arith.constant 0 : i32
    %c0_i32_0 = arith.constant 0 : i32
    return %arg0, %c0_i32 : i32, i32
  }
}

</mosaic_0001>

<llo_original>
// kernel: mlp_forward.1
$region0: #{mlp_forward.1}
  #allocation0 [shape = 'u32[]', space=smem, size = 0x4, offset = 0x4, fixed_abs, tag = 'smem constant byte address 0x4 - core index']
  #allocation1 [shape = 'u32[72,128]{1,0:T(1,128)}', space=vmem, size = 0x9000, scoped, tag = 'internal scratch']
  %s0 = inlined_call_operand.vmem [shape: f32[8,32], index: 0, kind: input, shape index: {}]
  %s1 = inlined_call_operand.vmem [shape: bf16[32,128], index: 1, kind: input, shape index: {}]
  %s2 = inlined_call_operand.vmem [shape: f32[1,128], index: 2, kind: input, shape index: {}]
  %s3 = inlined_call_operand.vmem [shape: bf16[128,10], index: 3, kind: input, shape index: {}]
  %s4 = inlined_call_operand.vmem [shape: f32[1,10], index: 4, kind: input, shape index: {}]
  %s5 = inlined_call_operand.hbm [shape: f32[8,10], index: 5, kind: output, shape index: {}]
  %s6 = sld [smem:[#allocation0]]
  $region30: #{mlp_forward.1} parent=0
    _
  %s8 = ssub.s32 1, %s6
  %s9 = scalar_select 0, %s8, %s6
  $region1: #{mlp_forward.1} parent=0
    #allocation2 [shape = 'u8[4096]{0}', space=vmem, size = 0x1000, scoped, tag = 'output window, operand 0, single buffered']
    #allocation3 [shape = 's32[1]{0}', space=sflag, size = 0x4, scoped, tag = 'scoped memory for mlp_forward.1']
    %10 = vsyncpa [#allocation3], 0
    // Predicated region
    $region2: #{mlp_forward.1} parent=1 // pred_check
      _
    $region3: #{mlp_forward.1} parent=1 // pred_check_branch
      %12 = sbr.rel (0) target = $region5
    $region4: #{mlp_forward.1} parent=1 // pred_region
      _
    $region5: #{mlp_forward.1} parent=1 // pred_fallthru
      _
    // Predicated region
    $region6: #{mlp_forward.1} parent=1 // pred_check
      _
    $region7: #{mlp_forward.1} parent=1 // pred_check_branch
      %14 = sbr.rel (0) target = $region9
    $region8: #{mlp_forward.1} parent=1 // pred_region
      _
    $region9: #{mlp_forward.1} parent=1 // pred_fallthru
      _
    // Predicated region
    $region10: #{mlp_forward.1} parent=1 // pred_check
      _
    $region11: #{mlp_forward.1} parent=1 // pred_check_branch
      %16 = sbr.rel (0) target = $region13
    $region12: #{mlp_forward.1} parent=1 // pred_region
      _
    $region13: #{mlp_forward.1} parent=1 // pred_fallthru
      _
    // Predicated region
    $region14: #{mlp_forward.1} parent=1 // pred_check
      _
    $region15: #{mlp_forward.1} parent=1 // pred_check_branch
      %18 = sbr.rel (0) target = $region17
    $region16: #{mlp_forward.1} parent=1 // pred_region
      _
    $region17: #{mlp_forward.1} parent=1 // pred_fallthru
      _
    // Predicated region
    $region18: #{mlp_forward.1} parent=1 // pred_check
      _
    $region19: #{mlp_forward.1} parent=1 // pred_check_branch
      %20 = sbr.rel (0) target = $region21
    $region20: #{mlp_forward.1} parent=1 // pred_region
      _
    $region21: #{mlp_forward.1} parent=1 // pred_fallthru
      _
    %v22 = vld [vmem:[%s0] sm:$0xff]
    %v23 = vpack.c.bf16 %v22, %v22
    %v24 = vld [vmem:[%s1] sm:$0xf]
    %v25 = vld [vmem:[%s1 + $0x4] sm:$0xf]
    %v26 = vld [vmem:[%s1 + $0x8] sm:$0xf]
    %v27 = vld [vmem:[%s1 + $0xc] sm:$0xf]
    %v28 = vld [vmem:[%s2] sm:$0x1]
    %v30 = vperm.slane %v28, 0
    %v36 = vunpack.c.l.b16 %v24
    %v37 = vunpack.c.l.b16 %v25
    %v38 = vunpack.c.l.b16 %v26
    %v39 = vunpack.c.l.b16 %v27
    %v40 = vpack.c.b16 %v37, %v36
    %v41 = vpack.c.b16 %v39, %v38
    %vm44 = vcmask 261120
    %v46 = vsel %vm44, %v23, 0
    %48 = vmatpush.bf16.msra.mxu0 0
    %49 = vmatpush.bf16.msra.mxu0 0
    %50 = vmatpush.bf16.msra.mxu0 0
    %51 = vmatpush.bf16.msra.mxu0 0
    %52 = vmatpush.bf16.msra.mxu0 0
    %53 = vmatpush.bf16.msra.mxu0 0
    %54 = vmatpush.bf16.msra.mxu0 %v41
    %55 = vmatpush.bf16.msra.mxu0 %v40
    %56 = vmatmul.bf16.gmra.mxu0 %v46
    %v57 = vpop.f32.mrf.mxu0
    %v58 = vadd.f32 %v30, %v57
    %v59 = vpop.f32.mrf.mxu0
    %60 = vdwg.mxu0
    %v61 = vmax.f32 %v58, 0.0
    %v62 = vpack.c.bf16 %v61, %v61
    %v63 = vld [vmem:[%s3] sm:$0xf]
    %v64 = vld [vmem:[%s3 + $0x4] sm:$0xf]
    %v65 = vld [vmem:[%s3 + $0x8] sm:$0xf]
    %v66 = vld [vmem:[%s3 + $0xc] sm:$0xf]
    %v67 = vld [vmem:[%s3 + $0x10] sm:$0xf]
    %v68 = vld [vmem:[%s3 + $0x14] sm:$0xf]
    %v69 = vld [vmem:[%s3 + $0x18] sm:$0xf]
    %v70 = vld [vmem:[%s3 + $0x1c] sm:$0xf]
    %v71 = vld [vmem:[%s3 + $0x20] sm:$0xf]
    %v72 = vld [vmem:[%s3 + $0x24] sm:$0xf]
    %v73 = vld [vmem:[%s3 + $0x28] sm:$0xf]
    %v74 = vld [vmem:[%s3 + $0x2c] sm:$0xf]
    %v75 = vld [vmem:[%s3 + $0x30] sm:$0xf]
    %v76 = vld [vmem:[%s3 + $0x34] sm:$0xf]
    %v77 = vld [vmem:[%s3 + $0x38] sm:$0xf]
    %v78 = vld [vmem:[%s3 + $0x3c] sm:$0xf]
    %v79 = vld [vmem:[%s4] sm:$0x1]
    %v81 = vperm.slane %v79, 0
    %v99 = vunpack.c.l.b16 %v63
    %v100 = vunpack.c.l.b16 %v64
    %v101 = vunpack.c.l.b16 %v65
    %v102 = vunpack.c.l.b16 %v66
    %v103 = vunpack.c.l.b16 %v67
    %v104 = vunpack.c.l.b16 %v68
    %v105 = vunpack.c.l.b16 %v69
    %v106 = vunpack.c.l.b16 %v70
    %v107 = vunpack.c.l.b16 %v71
    %v108 = vunpack.c.l.b16 %v72
    %v109 = vunpack.c.l.b16 %v73
    %v110 = vunpack.c.l.b16 %v74
    %v111 = vunpack.c.l.b16 %v75
    %v112 = vunpack.c.l.b16 %v76
    %v113 = vunpack.c.l.b16 %v77
    %v114 = vunpack.c.l.b16 %v78
    %v115 = vpack.c.b16 %v100, %v99
    %v116 = vpack.c.b16 %v102, %v101
    %v117 = vpack.c.b16 %v104, %v103
    %v118 = vpack.c.b16 %v106, %v105
    %v119 = vpack.c.b16 %v108, %v107
    %v120 = vpack.c.b16 %v110, %v109
    %v121 = vpack.c.b16 %v112, %v111
    %v122 = vpack.c.b16 %v114, %v113
    %131 = vmatpush.bf16.msra.mxu0 %v122
    %132 = vmatpush.bf16.msra.mxu0 %v121
    %133 = vmatpush.bf16.msra.mxu0 %v120
    %134 = vmatpush.bf16.msra.mxu0 %v119
    %135 = vmatpush.bf16.msra.mxu0 %v118
    %136 = vmatpush.bf16.msra.mxu0 %v117
    %137 = vmatpush.bf16.msra.mxu0 %v116
    %138 = vmatpush.bf16.msra.mxu0 %v115
    %139 = vmatmul.bf16.gmra.mxu0 %v62
    %v140 = vpop.f32.mrf.mxu0
    %v141 = vadd.f32 %v81, %v140
    %v142 = vpop.f32.mrf.mxu0
    %143 = vdwg.mxu0
    %vm144 = vcmask 80896
    %145 = vst.msk [vmem:[#allocation2] sm:$0xff] %vm144, %v141
    // Predicated region
    $region22: #{mlp_forward.1} parent=1 // pred_check
      _
    $region23: #{mlp_forward.1} parent=1 // pred_check_branch
      %147 = sbr.rel (0) target = $region25
    $region24: #{mlp_forward.1} parent=1 // pred_region
      %149 = vsyncadd [#allocation3], 0
      %s151 = sshll.u32 [#allocation2], 4
      %s152 = int_to_ptr.vmem [resolvable:$true] %s151
      %s153 = sshll.u32 %s5, 4
      %s154 = int_to_ptr.hbm [resolvable:$true] %s153
      %156 = dma.vmem_to_hbm [thread:$0]  %s152, 128, %s154, [#allocation3]
    $region25: #{mlp_forward.1} parent=1 // pred_fallthru
      _
    // Predicated region
    $region26: #{mlp_forward.1} parent=1 // pred_check
      _
    $region27: #{mlp_forward.1} parent=1 // pred_check_branch
      %158 = sbr.rel (0) target = $region29
    $region28: #{mlp_forward.1} parent=1 // pred_region
      %160 = dma.done [#allocation3], 128
    $region29: #{mlp_forward.1} parent=1 // pred_fallthru
      _
    %161 = vsyncpa [#allocation3], 1

</llo_original>
